<compile_context>
chip_gen: v7x
topology: tpu7x:2x2x1
jax: 0.10.0
libtpu: 0.0.40
codegen_flags: <defaults>
</compile_context>

<pallas_src>
import functools

import jax
import jax.numpy as jnp
from jax.experimental import pallas as pl
from jax.experimental.pallas import tpu as pltpu

CROSS_WEIGHT = 1.0
CENTER_WEIGHT = 1.0

_LANE = 128
_MAX_BATCH_TILE = 4096


def _round_up(x, m):
    return (x + m - 1) // m * m


def _cost_kernel(feat_ref, pred_ref, lab_ref, cent_ref, out_ref, *,
                 batch, block_rows):
    """One batch tile: partial center-loss / CE sums -> lanes (0,0) / (0,1)."""
    i = pl.program_id(0)

    feats = feat_ref[...]
    preds = pred_ref[...]
    centers = cent_ref[...]
    if feats.dtype != jnp.float32:          # bf16 inputs: upcast once on load
        feats = feats.astype(jnp.float32)
    if preds.dtype != jnp.float32:
        preds = preds.astype(jnp.float32)
    if centers.dtype != jnp.float32:
        centers = centers.astype(jnp.float32)
    labels = lab_ref[...]                   # (bt, 1) int32

    bt, c = preds.shape

    # Ragged batch tail: rows past the true batch size come from block overhang
    # (undefined data) and are masked out with jnp.where -- no HBM padding needed.
    row_ids = i * block_rows + jax.lax.broadcasted_iota(jnp.int32, (bt, 1), 0)
    valid = row_ids < batch                 # (bt, 1) bool

    # one-hot(labels) on the VPU; per-row class-center gather as an MXU matmul.
    class_ids = jax.lax.broadcasted_iota(jnp.int32, (bt, c), 1)
    onehot = (labels == class_ids).astype(jnp.float32)             # (bt, C)
    sel_centers = jnp.dot(onehot, centers, preferred_element_type=jnp.float32)

    # --- center loss partial: sum_i ||f_i - c_{y_i}||^2 over valid rows ---
    diff = feats - sel_centers
    row_sq = jnp.sum(diff * diff, axis=-1, keepdims=True)           # (bt, 1)
    center_part = jnp.sum(jnp.where(valid, row_sq, 0.0), keepdims=True)   # (1, 1)

    # --- cross entropy partial: sum_i (logsumexp(p_i) - p_i[y_i]) over valid rows ---
    m = jnp.max(preds, axis=-1, keepdims=True)
    lse = jnp.log(jnp.sum(jnp.exp(preds - m), axis=-1, keepdims=True)) + m
    true_logit = jnp.sum(onehot * preds, axis=-1, keepdims=True)
    ce_part = jnp.sum(jnp.where(valid, lse - true_logit, 0.0), keepdims=True)

    # Per-tile partials written once to a lane-dense (8,128) block: no loop-carried
    # scalar accumulator; the cross-tile reduction happens in the wrapper.
    sub = jax.lax.broadcasted_iota(jnp.int32, out_ref.shape, 0)
    lane = jax.lax.broadcasted_iota(jnp.int32, out_ref.shape, 1)
    out_ref[...] = (jnp.where((sub == 0) & (lane == 0), center_part, 0.0)
                    + jnp.where((sub == 0) & (lane == 1), ce_part, 0.0))


def _vmem_budget_bytes():
    cap = 64 * 1024 * 1024
    try:
        cap = int(getattr(pltpu.get_tpu_info(), "vmem_capacity_bytes", cap))
    except Exception:
        pass
    # v5e/v6e: 128 MiB physical -> ~96 MiB budget; v7x: 64 MiB -> ~48 MiB.
    return min(96 * 1024 * 1024, (cap * 3) // 4)


def cost_approximator(features, labels, predictions, centers, step='train'):
    """Returns (total_loss, {'{step}_center_loss': ..., '{step}_cross_entropy': ...})."""
    features = jnp.asarray(features)
    predictions = jnp.asarray(predictions)
    centers = jnp.asarray(centers)
    labels = jnp.asarray(labels).astype(jnp.int32).reshape(-1, 1)

    b, d = features.shape
    c = predictions.shape[1]

    fb = features.dtype.itemsize
    pb = predictions.dtype.itemsize
    cb = centers.dtype.itemsize

    # Sub-32-bit inputs need (16,128)/(32,128) minimum tiles -> coarser sublane step.
    sublane = 8 * max(1, 4 // max(1, min(fb, pb, cb)))

    vmem_budget = _vmem_budget_bytes()
    # Batch tile from the VMEM budget: double-buffered feats/preds rows + the
    # lane-padded (bt,1) label column + a rough allowance for f32 intermediates.
    per_row = 2 * (d * fb + c * pb + 4 * _LANE) + 16 * (d + c)
    fixed = 2 * c * d * cb + (2 << 20)        # centers buffers + headroom
    bt = max(vmem_budget - fixed, 1 << 20) // per_row
    bt = min(bt, _MAX_BATCH_TILE, _round_up(b, sublane))
    bt = max(sublane, (bt // sublane) * sublane)
    num_tiles = pl.cdiv(b, bt)

    cost = pl.CostEstimate(
        flops=int(2 * b * c * d + 10 * b * (c + d)),
        transcendentals=int(b * (c + 2)),
        bytes_accessed=int(b * (d * fb + c * pb + 4) + c * d * cb
                           + num_tiles * 8 * _LANE * 4),
    )

    kernel = functools.partial(_cost_kernel, batch=b, block_rows=bt)

    partials = pl.pallas_call(
        kernel,
        out_shape=jax.ShapeDtypeStruct((num_tiles * 8, _LANE), jnp.float32),
        grid_spec=pltpu.PrefetchScalarGridSpec(
            num_scalar_prefetch=0,
            grid=(num_tiles,),
            in_specs=[
                pl.BlockSpec((bt, d), lambda i: (i, 0)),   # features (no pad)
                pl.BlockSpec((bt, c), lambda i: (i, 0)),   # predictions (no pad)
                pl.BlockSpec((bt, 1), lambda i: (i, 0)),   # labels column
                pl.BlockSpec((c, d), lambda i: (0, 0)),    # centers (resident)
            ],
            out_specs=pl.BlockSpec((8, _LANE), lambda i: (i, 0)),
        ),
        compiler_params=pltpu.CompilerParams(
            dimension_semantics=("parallel",),
            vmem_limit_bytes=int(vmem_budget),
        ),
        cost_estimate=cost,
    )(features, predictions, labels, centers)

    # Cross-tile sum, /B and loss weighting stay in the JAX wrapper (tiny).
    parts = partials.reshape(num_tiles, 8, _LANE)
    center_loss = 0.5 * jnp.sum(parts[:, 0, 0]) / b
    ce_loss = jnp.sum(parts[:, 0, 1]) / b
    total_loss = CROSS_WEIGHT * ce_loss + CENTER_WEIGHT * center_loss

    # TODO(synk): ArcFaceLoss is instantiated in the torch module but never used in
    # forward(); it is intentionally not computed here.
    _dict_ = {f'{step}_center_loss': center_loss,
              f'{step}_cross_entropy': ce_loss}
    return total_loss, _dict_


def _reference(features, labels, predictions, centers):
    sel = centers[labels]
    center_loss = 0.5 * jnp.mean(jnp.sum((features - sel) ** 2, axis=-1))
    logp = jax.nn.log_softmax(predictions, axis=-1)
    ce = -jnp.mean(logp[jnp.arange(labels.shape[0]), labels])
    total = CROSS_WEIGHT * ce + CENTER_WEIGHT * center_loss
    return total, center_loss, ce


if __name__ == "__main__":
    # Small shapes consistent with the module: batch=8, embedding_dim=32, num_classes=8.
    B, D, C = 8, 32, 8
    key = jax.random.PRNGKey(0)
    k_feat, k_pred, k_lab, k_cent = jax.random.split(key, 4)

    features = jax.random.normal(k_feat, (B, D), dtype=jnp.float32)
    predictions = jax.random.normal(k_pred, (B, C), dtype=jnp.float32)
    labels = jax.random.randint(k_lab, (B,), 0, C, dtype=jnp.int32)
    # Deterministic CenterLoss parameter init (nn.Parameter(torch.randn(C, D)) analogue).
    centers = jax.random.normal(k_cent, (C, D), dtype=jnp.float32)

    total_loss, loss_dict = cost_approximator(features, labels, predictions, centers)
    jax.block_until_ready(total_loss)

    ref_total, ref_center, ref_ce = _reference(features, labels, predictions, centers)
    assert jnp.allclose(total_loss, ref_total, rtol=1e-5, atol=1e-5)
    assert jnp.allclose(loss_dict['train_center_loss'], ref_center, rtol=1e-5, atol=1e-5)
    assert jnp.allclose(loss_dict['train_cross_entropy'], ref_ce, rtol=1e-5, atol=1e-5)

    print("KERNEL_OK")
</pallas_src>

<mosaic_0001>
module attributes {stable_mosaic.version = 11 : i64} {
  func.func @_cost_kernel(%arg0: i32, %arg1: memref<8x32xf32, #tpu.memory_space<vmem>>, %arg2: memref<8x8xf32, #tpu.memory_space<vmem>>, %arg3: memref<8x1xi32, #tpu.memory_space<vmem>>, %arg4: memref<8x32xf32, #tpu.memory_space<vmem>>, %arg5: memref<8x128xf32, #tpu.memory_space<vmem>>) attributes {dimension_semantics = [#tpu.dimension_semantics<parallel>], iteration_bounds = array<i64: 1>, scalar_prefetch = 0 : i64, scratch_operands = 0 : i64, tpu.core_type = #tpu.core_type<tc>, window_params = [{transform_indices = @transform_0, window_bounds = array<i64: 8, 32>}, {transform_indices = @transform_1, window_bounds = array<i64: 8, 8>}, {transform_indices = @transform_2, window_bounds = array<i64: 8, 1>}, {pipeline_mode = #tpu.pipeline_mode<synchronous>, transform_indices = @transform_3, window_bounds = array<i64: 8, 32>}, {transform_indices = @transform_4, window_bounds = array<i64: 8, 128>}]} {
    %c0 = arith.constant 0 : index
    %c0_0 = arith.constant 0 : index
    %0 = vector.load %arg1[%c0, %c0_0] : memref<8x32xf32, #tpu.memory_space<vmem>>, vector<8x32xf32>
    %c0_1 = arith.constant 0 : index
    %c0_2 = arith.constant 0 : index
    %1 = vector.load %arg2[%c0_1, %c0_2] : memref<8x8xf32, #tpu.memory_space<vmem>>, vector<8x8xf32>
    %c0_3 = arith.constant 0 : index
    %c0_4 = arith.constant 0 : index
    %2 = vector.load %arg4[%c0_3, %c0_4] : memref<8x32xf32, #tpu.memory_space<vmem>>, vector<8x32xf32>
    %c0_5 = arith.constant 0 : index
    %c0_6 = arith.constant 0 : index
    %3 = vector.load %arg3[%c0_5, %c0_6] : memref<8x1xi32, #tpu.memory_space<vmem>>, vector<8x1xi32>
    %c8_i32 = arith.constant 8 : i32
    %4 = arith.muli %arg0, %c8_i32 : i32
    %5 = tpu.iota {dimensions = array<i32: 0>} : vector<8x1xi32>
    %6 = vector.broadcast %4 : i32 to vector<8x1xi32>
    %7 = arith.addi %6, %5 : vector<8x1xi32>
    %c8_i32_7 = arith.constant 8 : i32
    %8 = vector.broadcast %c8_i32_7 : i32 to vector<8x1xi32>
    %9 = arith.cmpi slt, %7, %8 : vector<8x1xi32>
    %10 = tpu.iota {dimensions = array<i32: 1>} : vector<8x8xi32>
    %11 = vector.broadcast %3 : vector<8x1xi32> to vector<8x8xi32>
    %12 = arith.cmpi eq, %11, %10 : vector<8x8xi32>
    %13 = arith.extui %12 : vector<8x8xi1> to vector<8x8xi32>
    %14 = arith.sitofp %13 : vector<8x8xi32> to vector<8x8xf32>
    %cst = arith.constant dense<0.000000e+00> : vector<8x32xf32>
    %15 = tpu.matmul %14, %2, %cst {dimension_numbers = #tpu.dot_dimension_numbers<[1], [0], [0], [1], [0, 0, 1, 1], [], []>} : vector<8x8xf32>, vector<8x32xf32>, vector<8x32xf32> -> vector<8x32xf32>
    %16 = arith.subf %0, %15 : vector<8x32xf32>
    %17 = arith.mulf %16, %16 : vector<8x32xf32>
    %cst_8 = arith.constant dense<0.000000e+00> : vector<8xf32>
    %18 = vector.multi_reduction <add>, %17, %cst_8 [1] : vector<8x32xf32> to vector<8xf32>
    %19 = vector.shape_cast %18 : vector<8xf32> to vector<8x1xf32>
    %cst_9 = arith.constant 0.000000e+00 : f32
    %20 = vector.broadcast %cst_9 : f32 to vector<8x1xf32>
    %21 = arith.select %9, %19, %20 : vector<8x1xi1>, vector<8x1xf32>
    %22 = vector.shape_cast %21 : vector<8x1xf32> to vector<1x8x1xf32>
    %cst_10 = arith.constant dense<0.000000e+00> : vector<1xf32>
    %23 = vector.multi_reduction <add>, %22, %cst_10 [1, 2] : vector<1x8x1xf32> to vector<1xf32>
    %24 = vector.shape_cast %23 : vector<1xf32> to vector<1x1x1xf32>
    %25 = vector.extract %24[0, 0, 0] : f32 from vector<1x1x1xf32>
    %26 = vector.broadcast %25 : f32 to vector<1x1xf32>
    %cst_11 = arith.constant dense<0xFF800000> : vector<8xf32>
    %27 = vector.multi_reduction <maximumf>, %1, %cst_11 [1] : vector<8x8xf32> to vector<8xf32>
    %28 = vector.shape_cast %27 : vector<8xf32> to vector<8x1xf32>
    %29 = vector.broadcast %28 : vector<8x1xf32> to vector<8x8xf32>
    %30 = arith.subf %1, %29 : vector<8x8xf32>
    %31 = math.exp %30 : vector<8x8xf32>
    %cst_12 = arith.constant dense<0.000000e+00> : vector<8xf32>
    %32 = vector.multi_reduction <add>, %31, %cst_12 [1] : vector<8x8xf32> to vector<8xf32>
    %33 = vector.shape_cast %32 : vector<8xf32> to vector<8x1xf32>
    %34 = math.log %33 : vector<8x1xf32>
    %35 = arith.addf %34, %28 : vector<8x1xf32>
    %36 = arith.mulf %14, %1 : vector<8x8xf32>
    %cst_13 = arith.constant dense<0.000000e+00> : vector<8xf32>
    %37 = vector.multi_reduction <add>, %36, %cst_13 [1] : vector<8x8xf32> to vector<8xf32>
    %38 = vector.shape_cast %37 : vector<8xf32> to vector<8x1xf32>
    %39 = arith.subf %35, %38 : vector<8x1xf32>
    %cst_14 = arith.constant 0.000000e+00 : f32
    %40 = vector.broadcast %cst_14 : f32 to vector<8x1xf32>
    %41 = arith.select %9, %39, %40 : vector<8x1xi1>, vector<8x1xf32>
    %42 = vector.shape_cast %41 : vector<8x1xf32> to vector<1x8x1xf32>
    %cst_15 = arith.constant dense<0.000000e+00> : vector<1xf32>
    %43 = vector.multi_reduction <add>, %42, %cst_15 [1, 2] : vector<1x8x1xf32> to vector<1xf32>
    %44 = vector.shape_cast %43 : vector<1xf32> to vector<1x1x1xf32>
    %45 = vector.extract %44[0, 0, 0] : f32 from vector<1x1x1xf32>
    %46 = vector.broadcast %45 : f32 to vector<1x1xf32>
    %47 = tpu.iota {dimensions = array<i32: 0>} : vector<8x128xi32>
    %48 = tpu.iota {dimensions = array<i32: 1>} : vector<8x128xi32>
    %c0_i32 = arith.constant 0 : i32
    %49 = vector.broadcast %c0_i32 : i32 to vector<8x128xi32>
    %50 = arith.cmpi eq, %47, %49 : vector<8x128xi32>
    %c0_i32_16 = arith.constant 0 : i32
    %51 = vector.broadcast %c0_i32_16 : i32 to vector<8x128xi32>
    %52 = arith.cmpi eq, %48, %51 : vector<8x128xi32>
    %53 = arith.andi %50, %52 : vector<8x128xi1>
    %cst_17 = arith.constant 0.000000e+00 : f32
    %54 = vector.shape_cast %26 : vector<1x1xf32> to vector<1x1xf32>
    %55 = vector.broadcast %54 : vector<1x1xf32> to vector<8x128xf32>
    %56 = vector.broadcast %cst_17 : f32 to vector<8x128xf32>
    %57 = arith.select %53, %55, %56 : vector<8x128xi1>, vector<8x128xf32>
    %c0_i32_18 = arith.constant 0 : i32
    %58 = vector.broadcast %c0_i32_18 : i32 to vector<8x128xi32>
    %59 = arith.cmpi eq, %47, %58 : vector<8x128xi32>
    %c1_i32 = arith.constant 1 : i32
    %60 = vector.broadcast %c1_i32 : i32 to vector<8x128xi32>
    %61 = arith.cmpi eq, %48, %60 : vector<8x128xi32>
    %62 = arith.andi %59, %61 : vector<8x128xi1>
    %cst_19 = arith.constant 0.000000e+00 : f32
    %63 = vector.shape_cast %46 : vector<1x1xf32> to vector<1x1xf32>
    %64 = vector.broadcast %63 : vector<1x1xf32> to vector<8x128xf32>
    %65 = vector.broadcast %cst_19 : f32 to vector<8x128xf32>
    %66 = arith.select %62, %64, %65 : vector<8x128xi1>, vector<8x128xf32>
    %67 = arith.addf %57, %66 : vector<8x128xf32>
    %c0_20 = arith.constant 0 : index
    %c0_21 = arith.constant 0 : index
    %68 = vector.load %arg5[%c0_20, %c0_21] : memref<8x128xf32, #tpu.memory_space<vmem>>, vector<8x128xf32>
    tpu.vector_store %arg5[%c0_20, %c0_21], %67 {strides = array<i32>} : memref<8x128xf32, #tpu.memory_space<vmem>>, vector<8x128xf32>,
    return
  }
  func.func @transform_0(%arg0: i32) -> (i32, i32) {
    %c0_i32 = arith.constant 0 : i32
    %c0_i32_0 = arith.constant 0 : i32
    return %arg0, %c0_i32 : i32, i32
  }
  func.func @transform_1(%arg0: i32) -> (i32, i32) {
    %c0_i32 = arith.constant 0 : i32
    %c0_i32_0 = arith.constant 0 : i32
    return %arg0, %c0_i32 : i32, i32
  }
  func.func @transform_2(%arg0: i32) -> (i32, i32) {
    %c0_i32 = arith.constant 0 : i32
    %c0_i32_0 = arith.constant 0 : i32
    return %arg0, %c0_i32 : i32, i32
  }
  func.func @transform_3(%arg0: i32) -> (i32, i32) {
    %c0_i32 = arith.constant 0 : i32
    %c0_i32_0 = arith.constant 0 : i32
    %c0_i32_1 = arith.constant 0 : i32
    return %c0_i32, %c0_i32_0 : i32, i32
  }
  func.func @transform_4(%arg0: i32) -> (i32, i32) {
    %c0_i32 = arith.constant 0 : i32
    %c0_i32_0 = arith.constant 0 : i32
    return %arg0, %c0_i32 : i32, i32
  }
}

</mosaic_0001>

<llo_original>
// kernel: tpu_custom_call.1
$region0: #{tpu_custom_call.1}
  #allocation0 [shape = 'u32[]', space=smem, size = 0x4, offset = 0x4, fixed_abs, tag = 'smem constant byte address 0x4 - core index']
  #allocation1 [shape = 'u32[144,128]{1,0:T(1,128)}', space=vmem, size = 0x12000, scoped, tag = 'internal scratch']
  %s0 = inlined_call_operand.vmem [shape: f32[8,32], index: 0, kind: input, shape index: {}]
  %s1 = inlined_call_operand.hbm [shape: f32[8,8], index: 1, kind: input, shape index: {}]
  %s2 = inlined_call_operand.vmem [shape: s32[8,1], index: 2, kind: input, shape index: {}]
  %s3 = inlined_call_operand.vmem [shape: f32[8,32], index: 3, kind: input, shape index: {}]
  %s4 = inlined_call_operand.hbm [shape: f32[8,128], index: 4, kind: output, shape index: {}]
  %s5 = sld [smem:[#allocation0]]
  $region30: #{tpu_custom_call.1} parent=0
    _
  %s7 = ssub.s32 1, %s5
  %s8 = scalar_select 0, %s7, %s5
  $region1: #{tpu_custom_call.1} parent=0
    #allocation2 [shape = 'u8[4096]{0}', space=vmem, size = 0x1000, scoped, tag = 'input window, operand 1, single buffered']
    #allocation3 [shape = 's32[1]{0}', space=sflag, size = 0x4, scoped, tag = 'scoped memory for tpu_custom_call.1']
    #allocation4 [shape = 's32[1]{0}', space=sflag, size = 0x4, scoped, tag = 'scoped memory for tpu_custom_call.1']
    #allocation5 [shape = 'u8[4096]{0}', space=vmem, size = 0x1000, scoped, tag = 'output window, operand 0, single buffered']
    %9 = vsyncpa [#allocation3], 0
    %10 = vsyncpa [#allocation4], 0
    // Predicated region
    $region2: #{tpu_custom_call.1} parent=1 // pred_check
      _
    $region3: #{tpu_custom_call.1} parent=1 // pred_check_branch
      %12 = sbr.rel (0) target = $region5
    $region4: #{tpu_custom_call.1} parent=1 // pred_region
      _
    $region5: #{tpu_custom_call.1} parent=1 // pred_fallthru
      _
    // Predicated region
    $region6: #{tpu_custom_call.1} parent=1 // pred_check
      _
    $region7: #{tpu_custom_call.1} parent=1 // pred_check_branch
      %14 = sbr.rel (0) target = $region9
    $region8: #{tpu_custom_call.1} parent=1 // pred_region
      %s16 = ssub.s32 128, 128
      %17 = vsyncadd [#allocation3], %s16
      %s19 = sshll.u32 [#allocation2], 4
      %s20 = int_to_ptr.vmem [resolvable:$true] %s19
      %22 = dma.hbm_to_vmem [thread:$0]  %s1, 128, %s20, [#allocation3]
    $region9: #{tpu_custom_call.1} parent=1 // pred_fallthru
      _
    // Predicated region
    $region10: #{tpu_custom_call.1} parent=1 // pred_check
      _
    $region11: #{tpu_custom_call.1} parent=1 // pred_check_branch
      %24 = sbr.rel (0) target = $region13
    $region12: #{tpu_custom_call.1} parent=1 // pred_region
      _
    $region13: #{tpu_custom_call.1} parent=1 // pred_fallthru
      _
    // Predicated region
    $region14: #{tpu_custom_call.1} parent=1 // pred_check
      _
    $region15: #{tpu_custom_call.1} parent=1 // pred_check_branch
      %26 = sbr.rel (0) target = $region17
    $region16: #{tpu_custom_call.1} parent=1 // pred_region
      _
    $region17: #{tpu_custom_call.1} parent=1 // pred_fallthru
      _
    // Predicated region
    $region18: #{tpu_custom_call.1} parent=1 // pred_check
      _
    $region19: #{tpu_custom_call.1} parent=1 // pred_check_branch
      %28 = sbr.rel (0) target = $region21
    $region20: #{tpu_custom_call.1} parent=1 // pred_region
      %29 = dma.done [#allocation3], 128
    $region21: #{tpu_custom_call.1} parent=1 // pred_fallthru
      _
    %v30 = vld [vmem:[%s0] sm:$0xff]
    %v31 = vld [vmem:[#allocation2] sm:$0xff]
    %v32 = vld [vmem:[%s3] sm:$0xff]
    %v33 = vld [vmem:[%s2] sm:$0xff]
    %s34 = smul.u32 0, 8
    %v35 = vlaneseq
    %v36 = vshrl.u32 %v35, 7
    %v37 = vstv %s34
    %v38 = vadd.s32 %v37, %v36
    %vm39 = vcmp.lt.s32.totalorder %v38, 8
    %v40 = vlaneseq
    %v41 = vand.u32 %v40, 127
    %42 = vset.pattern.permute.xlu0 0
    %43 = vperm.xlu0 %42, %v33
    %v44 = vpop.permute.xlu0 %43
    %vm45 = vcmp.eq.s32.totalorder %v44, %v41
    %v46 = vsel %vm45, 1, 0
    %v47 = vcvt.s32.f32 %v46
    %vm48 = vcmask 64512
    %v50 = vsel %vm48, %v47, 0
    %52 = vmatprep.subr.mxu0 0.0
    %53 = vmatpush1.msra.mxu0 %v32
    %54 = vmatprep.subr.mxu0 0.0
    %55 = vmatpush1.msra.mxu0 0.0
    %56 = vmatprep.subr.mxu0 0.0
    %57 = vmatpush1.msra.mxu0 0.0
    %58 = vmatprep.subr.mxu0 0.0
    %59 = vmatpush1.msra.mxu0 0.0
    %60 = vmatprep.subr.mxu0 0.0
    %61 = vmatpush1.msra.mxu0 0.0
    %62 = vmatprep.subr.mxu0 0.0
    %63 = vmatpush1.msra.mxu0 0.0
    %64 = vmatprep.subr.mxu0 0.0
    %65 = vmatpush1.msra.mxu0 0.0
    %66 = vmatprep.subr.mxu0 0.0
    %67 = vmatpush1.msra.mxu0 0.0
    %68 = vmatprep.subr.mxu0 0.0
    %69 = vmatpush1.msra.mxu0 0.0
    %70 = vmatprep.subr.mxu0 0.0
    %71 = vmatpush1.msra.mxu0 0.0
    %72 = vmatprep.subr.mxu0 0.0
    %73 = vmatpush1.msra.mxu0 0.0
    %74 = vmatprep.subr.mxu0 0.0
    %75 = vmatpush1.msra.mxu0 0.0
    %76 = vmatprep.subr.mxu0 0.0
    %77 = vmatpush1.msra.mxu0 0.0
    %78 = vmatprep.subr.mxu0 0.0
    %79 = vmatpush1.msra.mxu0 0.0
    %80 = vmatprep.subr.mxu0 0.0
    %81 = vmatpush1.msra.mxu0 0.0
    %82 = vmatprep.subr.mxu0 0.0
    %83 = vmatpush1.msra.mxu0 0.0
    %84 = vmatprep.subr.mxu0 0.0
    %85 = vmatpush1.msra.mxu0 0.0
    %86 = vmatprep.subr.mxu0 0.0
    %87 = vmatpush1.msra.mxu0 0.0
    %88 = vmatprep.subr.mxu0 0.0
    %89 = vmatpush1.msra.mxu0 0.0
    %90 = vmatprep.subr.mxu0 0.0
    %91 = vmatpush1.msra.mxu0 0.0
    %92 = vmatprep.subr.mxu0 0.0
    %93 = vmatpush1.msra.mxu0 0.0
    %94 = vmatprep.subr.mxu0 0.0
    %95 = vmatpush1.msra.mxu0 0.0
    %96 = vmatprep.subr.mxu0 0.0
    %97 = vmatpush1.msra.mxu0 0.0
    %98 = vmatprep.subr.mxu0 0.0
    %99 = vmatpush1.msra.mxu0 0.0
    %100 = vmatprep.subr.mxu0 0.0
    %101 = vmatpush1.msra.mxu0 0.0
    %102 = vmatprep.subr.mxu0 0.0
    %103 = vmatpush1.msra.mxu0 0.0
    %104 = vmatprep.subr.mxu0 0.0
    %105 = vmatpush1.msra.mxu0 0.0
    %106 = vmatprep.subr.mxu0 0.0
    %107 = vmatpush1.msra.mxu0 0.0
    %108 = vmatprep.subr.mxu0 0.0
    %109 = vmatpush1.msra.mxu0 0.0
    %110 = vmatprep.subr.mxu0 0.0
    %111 = vmatpush1.msra.mxu0 0.0
    %112 = vmatprep.subr.mxu0 0.0
    %113 = vmatpush1.msra.mxu0 0.0
    %114 = vmatprep.subr.mxu0 0.0
    %115 = vmatpush1.msra.mxu0 0.0
    %116 = vmatprep.mubr.f32.mxu0 0.0
    %117 = vmatmul.mubr.f32.gmra.mrb[0].mxu0 %v50
    %v118 = vpop.f32.mrb[0].mxu0
    %v119 = vadd.f32 0.0, %v118
    %v120 = vpop.f32.mrb[0].mxu0
    %121 = vdwg.mxu0
    %v122 = vsub.f32 %v30, %v119
    %v123 = vmul.f32 %v122, %v122
    %vm124 = vcmask 261120
    %v125 = vsel %vm124, %v123, 0.0
    %126 = vadd.xlane.f32.xlu0 %v125
    %v127 = vpop.xlane.xlu0 %126
    %v128 = vsel %vm39, %v127, 0.0
    %vm129 = vcmask 7168
    %v130 = vsel %vm129, %v128, 0.0
    %131 = vadd.xlane.f32.xlu0 %v130
    %v132 = vpop.xlane.xlu0 %131
    %v133 = vrot.slane %v132, 4
    %v134 = vadd.f32 %v132, %v133
    %v135 = vrot.slane %v134, 2
    %v136 = vadd.f32 %v134, %v135
    %v137 = vrot.slane %v136, 1
    %v138 = vadd.f32 %v136, %v137
    %s139 = vtos %v138
    %v140 = vsel %vm48, %v31, -inf
    %141 = vmax.xlane.f32.xlu0 %v140
    %v142 = vpop.xlane.xlu0 %141
    %v143 = vsub.f32 %v31, %v142
    %v144 = vmul.f32 %v143, 1.442695
    %v145 = vpow.pop %v144
    %v146 = vsel %vm48, %v145, 0.0
    %147 = vadd.xlane.f32.xlu0 %v146
    %v148 = vpop.xlane.xlu0 %147
    %v149 = vlog2.pop %v148
    %v150 = vmul.f32 %v149, 0.6931472
    %v151 = vadd.f32 %v150, %v142
    %v152 = vmul.f32 %v47, %v31
    %v153 = vsel %vm48, %v152, 0.0
    %154 = vadd.xlane.f32.xlu0 %v153
    %v155 = vpop.xlane.xlu0 %154
    %v156 = vsub.f32 %v151, %v155
    %v157 = vsel %vm39, %v156, 0.0
    %v158 = vsel %vm129, %v157, 0.0
    %159 = vadd.xlane.f32.xlu0 %v158
    %v160 = vpop.xlane.xlu0 %159
    %v161 = vrot.slane %v160, 4
    %v162 = vadd.f32 %v160, %v161
    %v163 = vrot.slane %v162, 2
    %v164 = vadd.f32 %v162, %v163
    %v165 = vrot.slane %v164, 1
    %v166 = vadd.f32 %v164, %v165
    %s167 = vtos %v166
    %vm168 = vcmp.eq.s32.totalorder %v36, 0
    %vm169 = vcmp.eq.s32.totalorder %v41, 0
    %vm170 = vmand %vm168, %vm169
    %v171 = vstv %s139
    %v172 = vsel %vm170, %v171, 0.0
    %vm173 = vcmp.eq.s32.totalorder %v41, 1
    %vm174 = vmand %vm168, %vm173
    %v175 = vstv %s167
    %v176 = vsel %vm174, %v175, 0.0
    %v177 = vadd.f32 %v172, %v176
    %178 = vst [vmem:[#allocation5] sm:$0xff] %v177
    // Predicated region
    $region22: #{tpu_custom_call.1} parent=1 // pred_check
      _
    $region23: #{tpu_custom_call.1} parent=1 // pred_check_branch
      %180 = sbr.rel (0) target = $region25
    $region24: #{tpu_custom_call.1} parent=1 // pred_region
      %s182 = ssub.s32 128, 128
      %183 = vsyncadd [#allocation4], %s182
      %s185 = sshll.u32 [#allocation5], 4
      %s186 = int_to_ptr.vmem [resolvable:$true] %s185
      %188 = dma.vmem_to_hbm [thread:$0]  %s186, 128, %s4, [#allocation4]
    $region25: #{tpu_custom_call.1} parent=1 // pred_fallthru
      _
    // Predicated region
    $region26: #{tpu_custom_call.1} parent=1 // pred_check
      _
    $region27: #{tpu_custom_call.1} parent=1 // pred_check_branch
      %190 = sbr.rel (0) target = $region29
    $region28: #{tpu_custom_call.1} parent=1 // pred_region
      %191 = dma.done [#allocation4], 128
    $region29: #{tpu_custom_call.1} parent=1 // pred_fallthru
      _
    %192 = vsyncpa [#allocation3], 1
    %193 = vsyncpa [#allocation4], 1

</llo_original>
